<compile_context>
chip_gen: v5e
topology: v5e:2x2
jax: 0.10.0
libtpu: 0.0.40
codegen_flags: <defaults>
</compile_context>

<pallas_src>
import numpy as np
import jax
import jax.numpy as jnp
from jax import lax
from jax.experimental import pallas as pl
from jax.experimental.pallas import tpu as pltpu


def _bilinear_matrix(in_size: int, out_size: int) -> np.ndarray:
    """Row-stochastic matrix implementing PyTorch bilinear upsample (align_corners=False)."""
    A = np.zeros((out_size, in_size), dtype=np.float32)
    scale = in_size / out_size
    for i in range(out_size):
        src = max((i + 0.5) * scale - 0.5, 0.0)
        i0 = min(int(np.floor(src)), in_size - 1)
        i1 = min(i0 + 1, in_size - 1)
        lam = src - i0
        A[i, i0] += 1.0 - lam
        A[i, i1] += lam
    return A


def unet_dsv3_kernel(x_ref, m0_ref, m1_ref, b_ref, ah_ref, bwt_ref, out_ref):
    # x_ref:   (1, Ho+1, (Wo+1)*4*Cin)  padded + space-to-depth'd input (one batch elem)
    # m0_ref:  ((Wo+1)*4*Cin, Wo*Cout)  block-banded conv weights, H-tap a=0
    # m1_ref:  ((Wo+1)*4*Cin, Wo*Cout)  block-banded conv weights, H-tap a=1
    # b_ref:   (1, Wo*Cout)             conv bias tiled across W
    # ah_ref:  (Hu, Ho)                 bilinear H-interpolation matrix
    # bwt_ref: (Wo*Cout, Wu*Cout)       bilinear W-interp, kron(A_w, I_Cout)^T
    # out_ref: (1, Hu, Wu*Cout)         lane-dense output
    _, Hp, _ = x_ref.shape
    Ho = Hp - 1

    x = x_ref[0]                                  # (Ho+1, (Wo+1)*4*Cin) f32

    # Conv2d(k=4, s=2, p=1): one wide-K MXU matmul per H-tap of the space-to-depth'd
    # 2x2 conv; the W-taps and input channels live in the (banded) K dimension, and the
    # result is produced directly in the (Ho, Wo*Cout) lane-dense layout.
    conv = jnp.dot(x[0:Ho, :], m0_ref[...], preferred_element_type=jnp.float32)
    conv = conv + jnp.dot(x[1:Ho + 1, :], m1_ref[...],
                          preferred_element_type=jnp.float32)
    conv = conv + b_ref[...]                      # (Ho, Wo*Cout)

    # Bilinear upsample (align_corners=False) as two matmuls; second one lands the
    # result already in the lane-dense (Hu, Wu*Cout) output layout.
    t = jnp.dot(ah_ref[...], conv, preferred_element_type=jnp.float32)   # (Hu, Wo*Cout)
    y = jnp.dot(t, bwt_ref[...], preferred_element_type=jnp.float32)     # (Hu, Wu*Cout)

    out_ref[0] = y.astype(out_ref.dtype)


def unet_dsv3(x_nchw, w_oihw, bias, scale_factor: int):
    """UnetDsv3 forward. x: (N, Cin, H, W) f32 -> (N, Cout, (H//2)*s, (W//2)*s) f32."""
    N, Cin, H, W = x_nchw.shape
    Cout, _, KH, KW = w_oihw.shape
    assert (KH, KW) == (4, 4) and H % 2 == 0 and W % 2 == 0
    Ho, Wo = H // 2, W // 2                        # conv output size (k=4, s=2, p=1)
    Hu, Wu = Ho * scale_factor, Wo * scale_factor  # upsampled output size
    C4 = 4 * Cin
    Hp, Wp = Ho + 1, Wo + 1                        # space-to-depth'd padded size

    # ---- wrapper-side layout glue (cheap XLA ops) ---------------------------------
    # NCHW -> NHWC, zero-pad H/W by 1, space-to-depth(2): a 4x4 stride-2 conv on the
    # padded (H+2, W+2, Cin) map == a 2x2 stride-1 VALID conv on (Ho+1, Wo+1, 4*Cin).
    x = jnp.transpose(x_nchw, (0, 2, 3, 1))
    x = jnp.pad(x, ((0, 0), (1, 1), (1, 1), (0, 0)))
    x = x.reshape(N, Hp, 2, Wp, 2, Cin).transpose(0, 1, 3, 2, 4, 5)
    x = x.reshape(N, Hp, Wp * C4)                  # flatten (W, depth) into the lane dim
    # TODO(synk): for large feature maps, tile H-rows with a 1-row halo via the index_map
    # (and a tiled im2col) instead of the banded-weight single-matmul formulation.

    # Conv weights: OIHW -> space-to-depth kernel W2[a, b, (p, q, ci), co].
    w2 = jnp.transpose(w_oihw, (2, 3, 1, 0))               # (4, 4, Cin, Cout), HWIO
    w2 = w2.reshape(2, 2, 2, 2, Cin, Cout).transpose(0, 2, 1, 3, 4, 5)
    w2 = w2.reshape(2, 2, C4, Cout)                        # [a, b, depth, co]

    # Fold the two W-taps into block-banded matrices so each H-tap is one wide-K matmul:
    #   M_a[(w+b)*C4 + d, w*Cout + co] = W2[a, b, d, co]
    shift = []
    for b in range(2):
        sel = np.zeros((Wp, Wo), np.float32)
        sel[np.arange(Wo) + b, np.arange(Wo)] = 1.0
        shift.append(jnp.asarray(sel))
    m0 = jnp.kron(shift[0], w2[0, 0]) + jnp.kron(shift[1], w2[0, 1])   # (Wp*C4, Wo*Cout)
    m1 = jnp.kron(shift[0], w2[1, 0]) + jnp.kron(shift[1], w2[1, 1])
    bias_row = jnp.tile(bias.astype(jnp.float32), Wo).reshape(1, Wo * Cout)

    # Bilinear (align_corners=False) interpolation matrices, exact trace-time constants.
    ah = jnp.asarray(_bilinear_matrix(Ho, Hu))                              # (Hu, Ho)
    bwt = jnp.asarray(
        np.kron(_bilinear_matrix(Wo, Wu),
                np.eye(Cout, dtype=np.float32)).T)                          # (Wo*Cout, Wu*Cout)

    out = pl.pallas_call(
        unet_dsv3_kernel,
        out_shape=jax.ShapeDtypeStruct((N, Hu, Wu * Cout), jnp.float32),
        grid=(N,),
        in_specs=[
            pl.BlockSpec((1, Hp, Wp * C4), lambda n: (n, 0, 0)),
            pl.BlockSpec((Wp * C4, Wo * Cout), lambda n: (0, 0)),
            pl.BlockSpec((Wp * C4, Wo * Cout), lambda n: (0, 0)),
            pl.BlockSpec((1, Wo * Cout), lambda n: (0, 0)),
            pl.BlockSpec((Hu, Ho), lambda n: (0, 0)),
            pl.BlockSpec((Wo * Cout, Wu * Cout), lambda n: (0, 0)),
        ],
        out_specs=pl.BlockSpec((1, Hu, Wu * Cout), lambda n: (n, 0, 0)),
        compiler_params=pltpu.CompilerParams(
            dimension_semantics=("parallel",)),
    )(x, m0, m1, bias_row, ah, bwt)

    # lane-dense (N, Hu, Wu*Cout) -> public NCHW layout
    return jnp.transpose(out.reshape(N, Hu, Wu, Cout), (0, 3, 1, 2))


def reference(x_nchw, w_oihw, bias, scale_factor):
    """Pure-JAX reference matching the PyTorch UnetDsv3 forward."""
    y = lax.conv_general_dilated(
        x_nchw, w_oihw, window_strides=(2, 2), padding=((1, 1), (1, 1)),
        dimension_numbers=("NCHW", "OIHW", "NCHW"),
        precision=lax.Precision.HIGHEST)
    y = y + bias.reshape(1, -1, 1, 1)
    n, c, ho, wo = y.shape
    return jax.image.resize(
        y, (n, c, ho * scale_factor, wo * scale_factor),
        method="bilinear", precision=lax.Precision.HIGHEST)


if __name__ == "__main__":
    key = jax.random.PRNGKey(0)
    N, Cin, Cout, H, W, scale = 2, 4, 8, 16, 16, 2

    k1, k2, k3 = jax.random.split(key, 3)
    x = jax.random.normal(k1, (N, Cin, H, W), jnp.float32)
    # Conv2d(in_size, out_size, kernel_size=4, stride=2, padding=1) params
    w = jax.random.normal(k2, (Cout, Cin, 4, 4), jnp.float32) * 0.1
    b = jax.random.normal(k3, (Cout,), jnp.float32) * 0.1

    out = jax.block_until_ready(unet_dsv3(x, w, b, scale))

    ref = reference(x, w, b, scale)
    assert out.shape == (N, Cout, (H // 2) * scale, (W // 2) * scale)
    err = float(jnp.max(jnp.abs(out - ref)))
    assert jnp.allclose(out, ref, atol=1e-4, rtol=1e-4), err

    print("KERNEL_OK")
</pallas_src>

<mosaic_0001>
module attributes {stable_mosaic.version = 11 : i64} {
  func.func @unet_dsv3_kernel(%arg0: i32, %arg1: memref<1x9x144xf32, #tpu.memory_space<vmem>>, %arg2: memref<144x64xf32, #tpu.memory_space<vmem>>, %arg3: memref<144x64xf32, #tpu.memory_space<vmem>>, %arg4: memref<1x64xf32, #tpu.memory_space<vmem>>, %arg5: memref<16x8xf32, #tpu.memory_space<vmem>>, %arg6: memref<64x128xf32, #tpu.memory_space<vmem>>, %arg7: memref<1x16x128xf32, #tpu.memory_space<vmem>>) attributes {dimension_semantics = [#tpu.dimension_semantics<parallel>], iteration_bounds = array<i64: 2>, scalar_prefetch = 0 : i64, scratch_operands = 0 : i64, tpu.core_type = #tpu.core_type<tc>, window_params = [{transform_indices = @transform_0, window_bounds = array<i64: 1, 9, 144>}, {pipeline_mode = #tpu.pipeline_mode<synchronous>, transform_indices = @transform_1, window_bounds = array<i64: 144, 64>}, {pipeline_mode = #tpu.pipeline_mode<synchronous>, transform_indices = @transform_2, window_bounds = array<i64: 144, 64>}, {pipeline_mode = #tpu.pipeline_mode<synchronous>, transform_indices = @transform_3, window_bounds = array<i64: 1, 64>}, {pipeline_mode = #tpu.pipeline_mode<synchronous>, transform_indices = @transform_4, window_bounds = array<i64: 16, 8>}, {pipeline_mode = #tpu.pipeline_mode<synchronous>, transform_indices = @transform_5, window_bounds = array<i64: 64, 128>}, {transform_indices = @transform_6, window_bounds = array<i64: 1, 16, 128>}]} {
    %c0 = arith.constant 0 : index
    %c0_0 = arith.constant 0 : index
    %c0_1 = arith.constant 0 : index
    %0 = vector.load %arg1[%c0, %c0_0, %c0_1] : memref<1x9x144xf32, #tpu.memory_space<vmem>>, vector<1x9x144xf32>
    %1 = vector.shape_cast %0 : vector<1x9x144xf32> to vector<9x144xf32>
    %2 = vector.extract_strided_slice %1 {offsets = [0, 0], sizes = [8, 144], strides = [1, 1]} : vector<9x144xf32> to vector<8x144xf32>
    %c0_2 = arith.constant 0 : index
    %c0_3 = arith.constant 0 : index
    %3 = vector.load %arg2[%c0_2, %c0_3] : memref<144x64xf32, #tpu.memory_space<vmem>>, vector<144x64xf32>
    %cst = arith.constant dense<0.000000e+00> : vector<8x64xf32>
    %4 = tpu.matmul %2, %3, %cst {dimension_numbers = #tpu.dot_dimension_numbers<[1], [0], [0], [1], [0, 0, 1, 1], [], []>} : vector<8x144xf32>, vector<144x64xf32>, vector<8x64xf32> -> vector<8x64xf32>
    %5 = vector.extract_strided_slice %1 {offsets = [1, 0], sizes = [8, 144], strides = [1, 1]} : vector<9x144xf32> to vector<8x144xf32>
    %c0_4 = arith.constant 0 : index
    %c0_5 = arith.constant 0 : index
    %6 = vector.load %arg3[%c0_4, %c0_5] : memref<144x64xf32, #tpu.memory_space<vmem>>, vector<144x64xf32>
    %cst_6 = arith.constant dense<0.000000e+00> : vector<8x64xf32>
    %7 = tpu.matmul %5, %6, %cst_6 {dimension_numbers = #tpu.dot_dimension_numbers<[1], [0], [0], [1], [0, 0, 1, 1], [], []>} : vector<8x144xf32>, vector<144x64xf32>, vector<8x64xf32> -> vector<8x64xf32>
    %8 = arith.addf %4, %7 : vector<8x64xf32>
    %c0_7 = arith.constant 0 : index
    %c0_8 = arith.constant 0 : index
    %9 = vector.load %arg4[%c0_7, %c0_8] : memref<1x64xf32, #tpu.memory_space<vmem>>, vector<1x64xf32>
    %10 = vector.broadcast %9 : vector<1x64xf32> to vector<8x64xf32>
    %11 = arith.addf %8, %10 : vector<8x64xf32>
    %c0_9 = arith.constant 0 : index
    %c0_10 = arith.constant 0 : index
    %12 = vector.load %arg5[%c0_9, %c0_10] : memref<16x8xf32, #tpu.memory_space<vmem>>, vector<16x8xf32>
    %cst_11 = arith.constant dense<0.000000e+00> : vector<16x64xf32>
    %13 = tpu.matmul %12, %11, %cst_11 {dimension_numbers = #tpu.dot_dimension_numbers<[1], [0], [0], [1], [0, 0, 1, 1], [], []>} : vector<16x8xf32>, vector<8x64xf32>, vector<16x64xf32> -> vector<16x64xf32>
    %c0_12 = arith.constant 0 : index
    %c0_13 = arith.constant 0 : index
    %14 = vector.load %arg6[%c0_12, %c0_13] : memref<64x128xf32, #tpu.memory_space<vmem>>, vector<64x128xf32>
    %cst_14 = arith.constant dense<0.000000e+00> : vector<16x128xf32>
    %15 = tpu.matmul %13, %14, %cst_14 {dimension_numbers = #tpu.dot_dimension_numbers<[1], [0], [0], [1], [0, 0, 1, 1], [], []>} : vector<16x64xf32>, vector<64x128xf32>, vector<16x128xf32> -> vector<16x128xf32>
    %c0_15 = arith.constant 0 : index
    %c0_16 = arith.constant 0 : index
    %c0_17 = arith.constant 0 : index
    %16 = vector.load %arg7[%c0_15, %c0_16, %c0_17] : memref<1x16x128xf32, #tpu.memory_space<vmem>>, vector<1x16x128xf32>
    %17 = vector.shape_cast %16 : vector<1x16x128xf32> to vector<16x128xf32>
    %18 = vector.shape_cast %15 : vector<16x128xf32> to vector<1x16x128xf32>
    tpu.vector_store %arg7[%c0_15, %c0_16, %c0_17], %18 {strides = array<i32>} : memref<1x16x128xf32, #tpu.memory_space<vmem>>, vector<1x16x128xf32>,
    return
  }
  func.func @transform_0(%arg0: i32) -> (i32, i32, i32) {
    %c0_i32 = arith.constant 0 : i32
    %c0_i32_0 = arith.constant 0 : i32
    %c0_i32_1 = arith.constant 0 : i32
    return %arg0, %c0_i32, %c0_i32_0 : i32, i32, i32
  }
  func.func @transform_1(%arg0: i32) -> (i32, i32) {
    %c0_i32 = arith.constant 0 : i32
    %c0_i32_0 = arith.constant 0 : i32
    %c0_i32_1 = arith.constant 0 : i32
    return %c0_i32, %c0_i32_0 : i32, i32
  }
  func.func @transform_2(%arg0: i32) -> (i32, i32) {
    %c0_i32 = arith.constant 0 : i32
    %c0_i32_0 = arith.constant 0 : i32
    %c0_i32_1 = arith.constant 0 : i32
    return %c0_i32, %c0_i32_0 : i32, i32
  }
  func.func @transform_3(%arg0: i32) -> (i32, i32) {
    %c0_i32 = arith.constant 0 : i32
    %c0_i32_0 = arith.constant 0 : i32
    %c0_i32_1 = arith.constant 0 : i32
    return %c0_i32, %c0_i32_0 : i32, i32
  }
  func.func @transform_4(%arg0: i32) -> (i32, i32) {
    %c0_i32 = arith.constant 0 : i32
    %c0_i32_0 = arith.constant 0 : i32
    %c0_i32_1 = arith.constant 0 : i32
    return %c0_i32, %c0_i32_0 : i32, i32
  }
  func.func @transform_5(%arg0: i32) -> (i32, i32) {
    %c0_i32 = arith.constant 0 : i32
    %c0_i32_0 = arith.constant 0 : i32
    %c0_i32_1 = arith.constant 0 : i32
    return %c0_i32, %c0_i32_0 : i32, i32
  }
  func.func @transform_6(%arg0: i32) -> (i32, i32, i32) {
    %c0_i32 = arith.constant 0 : i32
    %c0_i32_0 = arith.constant 0 : i32
    %c0_i32_1 = arith.constant 0 : i32
    return %arg0, %c0_i32, %c0_i32_0 : i32, i32, i32
  }
}

</mosaic_0001>

<llo_original>
// kernel: tpu_custom_call.1
$region0: #{tpu_custom_call.1}
  #allocation0 [shape = 'u32[]', space=smem, size = 0x4, offset = 0x4, fixed_abs, tag = 'smem constant byte address 0x4 - core index']
  #allocation1 [shape = 'u32[72,128]{1,0:T(1,128)}', space=vmem, size = 0x9000, scoped, tag = 'internal scratch']
  %s0 = inlined_call_operand.vmem [shape: f32[2,9,144], index: 0, kind: input, shape index: {}]
  %s1 = inlined_call_operand.vmem [shape: f32[144,64], index: 1, kind: input, shape index: {}]
  %s2 = inlined_call_operand.vmem [shape: f32[144,64], index: 2, kind: input, shape index: {}]
  %s3 = inlined_call_operand.vmem [shape: f32[1,64], index: 3, kind: input, shape index: {}]
  %s4 = inlined_call_operand.vmem [shape: f32[16,8], index: 4, kind: input, shape index: {}]
  %s5 = inlined_call_operand.vmem [shape: f32[64,128], index: 5, kind: input, shape index: {}]
  %s6 = inlined_call_operand.hbm [shape: f32[2,16,128], index: 6, kind: output, shape index: {}]
  %s7 = sld [smem:[#allocation0]]
  $region57: #{tpu_custom_call.1} parent=0
    _
  %s9 = ssub.s32 1, %s7
  %s10 = scalar_select 0, %s9, %s7
  $region1: #{tpu_custom_call.1} parent=0
    #allocation2 [shape = 'u8[16384]{0}', space=vmem, size = 0x4000, scoped, tag = 'output window, operand 0']
    #allocation3 [shape = 's32[2]{0}', space=sflag, size = 0x8, scoped, tag = 'scoped memory for tpu_custom_call.1']
    %11 = vsyncpa [#allocation3], 0
    %s12 = scalar_lea.sflag [#allocation3], 1
    %13 = vsyncpa %s12, 0
    loop: start=0, step=1, limit=4
    $region2: #{tpu_custom_call.1} parent=1 // loop_pre_header
      _
    $region3: #{tpu_custom_call.1} parent=1 // loop_header
      %s15 = sphi 0, %s19
      %p16 = scmp.ge.s32.totalorder %s15, 4
      %s25 = sphi 0, %s27
      %s28 = sphi 0, %s25
      %s29 = sphi 0, %s28
      %s45 = sphi 0, %s29
      %s49 = sphi 0, %s49
      %s51 = sphi 0, %s49
      %s52 = sphi 0, %s51
      %s66 = sphi 0, %s52
      %s70 = sphi 0, %s70
      %s72 = sphi 0, %s70
      %s73 = sphi 0, %s72
      %s87 = sphi 0, %s73
      %s91 = sphi 0, %s91
      %s93 = sphi 0, %s91
      %s94 = sphi 0, %s93
      %s108 = sphi 0, %s94
      %s112 = sphi 0, %s112
      %s114 = sphi 0, %s112
      %s115 = sphi 0, %s114
      %s129 = sphi 0, %s115
      %s133 = sphi 0, %s133
      %s135 = sphi 0, %s133
      %s136 = sphi 0, %s135
      %s150 = sphi 0, %s136
      %s156 = sphi 0, %s158
      %s159 = sphi 0, %s156
      %s160 = sphi 0, %s159
      %s176 = sphi 0, %s160
    $region4: #{tpu_custom_call.1} parent=1 // loop_header_branch
      %18 = sbr.rel (%p16) target = $region8
    $region5: #{tpu_custom_call.1} parent=1 // loop_body
      %s20 = ssub.s32 %s15, 1
      %s21 = ssub.s32 %s15, 2
      %s22 = sadd.s32 %s15, 1
      %s23 = ssub.s32 %s15, %s22
      %p24 = scmp.eq.s32.totalorder %s23, 0
      %s26 = sadd.s32 %s25, 1
      %s27 = scalar_select %p24, %s25, %s26
      %p30 = pneg %p24
      %p31 = scmp.eq.s32.totalorder %s15, 1
      %p32 = por %p30, %p31
      %p33 = scmp.ne.s32.totalorder %s25, %s28
      %p34 = scmp.eq.s32.totalorder %s15, 0
      %p35 = por %p33, %p34
      %p36 = scmp.ne.s32.totalorder %s25, %s28
      %p37 = scmp.eq.s32.totalorder %s20, 1
      %p38 = por %p36, %p37
      %p39 = scmp.ne.s32.totalorder %s28, %s29
      %p40 = scmp.eq.s32.totalorder %s20, 0
      %p41 = por %p39, %p40
      %p42 = scmp.ne.s32.totalorder %s28, %s29
      %p43 = scmp.eq.s32.totalorder %s21, 1
      %p44 = por %p42, %p43
      %p46 = scmp.ne.s32.totalorder %s29, %s45
      %p47 = scmp.eq.s32.totalorder %s21, 0
      %p48 = por %p46, %p47
      %s50 = sadd.s32 %s49, 1
      %p53 = scmp.eq.s32.totalorder %s15, 1
      %p54 = scmp.ne.s32.totalorder %s49, %s51
      %p55 = scmp.eq.s32.totalorder %s15, 0
      %p56 = por %p54, %p55
      %p57 = scmp.ne.s32.totalorder %s49, %s51
      %p58 = scmp.eq.s32.totalorder %s20, 1
      %p59 = por %p57, %p58
      %p60 = scmp.ne.s32.totalorder %s51, %s52
      %p61 = scmp.eq.s32.totalorder %s20, 0
      %p62 = por %p60, %p61
      %p63 = scmp.ne.s32.totalorder %s51, %s52
      %p64 = scmp.eq.s32.totalorder %s21, 1
      %p65 = por %p63, %p64
      %p67 = scmp.ne.s32.totalorder %s52, %s66
      %p68 = scmp.eq.s32.totalorder %s21, 0
      %p69 = por %p67, %p68
      %s71 = sadd.s32 %s70, 1
      %p74 = scmp.eq.s32.totalorder %s15, 1
      %p75 = scmp.ne.s32.totalorder %s70, %s72
      %p76 = scmp.eq.s32.totalorder %s15, 0
      %p77 = por %p75, %p76
      %p78 = scmp.ne.s32.totalorder %s70, %s72
      %p79 = scmp.eq.s32.totalorder %s20, 1
      %p80 = por %p78, %p79
      %p81 = scmp.ne.s32.totalorder %s72, %s73
      %p82 = scmp.eq.s32.totalorder %s20, 0
      %p83 = por %p81, %p82
      %p84 = scmp.ne.s32.totalorder %s72, %s73
      %p85 = scmp.eq.s32.totalorder %s21, 1
      %p86 = por %p84, %p85
      %p88 = scmp.ne.s32.totalorder %s73, %s87
      %p89 = scmp.eq.s32.totalorder %s21, 0
      %p90 = por %p88, %p89
      %s92 = sadd.s32 %s91, 1
      %p95 = scmp.eq.s32.totalorder %s15, 1
      %p96 = scmp.ne.s32.totalorder %s91, %s93
      %p97 = scmp.eq.s32.totalorder %s15, 0
      %p98 = por %p96, %p97
      %p99 = scmp.ne.s32.totalorder %s91, %s93
      %p100 = scmp.eq.s32.totalorder %s20, 1
      %p101 = por %p99, %p100
      %p102 = scmp.ne.s32.totalorder %s93, %s94
      %p103 = scmp.eq.s32.totalorder %s20, 0
      %p104 = por %p102, %p103
      %p105 = scmp.ne.s32.totalorder %s93, %s94
      %p106 = scmp.eq.s32.totalorder %s21, 1
      %p107 = por %p105, %p106
      %p109 = scmp.ne.s32.totalorder %s94, %s108
      %p110 = scmp.eq.s32.totalorder %s21, 0
      %p111 = por %p109, %p110
      %s113 = sadd.s32 %s112, 1
      %p116 = scmp.eq.s32.totalorder %s15, 1
      %p117 = scmp.ne.s32.totalorder %s112, %s114
      %p118 = scmp.eq.s32.totalorder %s15, 0
      %p119 = por %p117, %p118
      %p120 = scmp.ne.s32.totalorder %s112, %s114
      %p121 = scmp.eq.s32.totalorder %s20, 1
      %p122 = por %p120, %p121
      %p123 = scmp.ne.s32.totalorder %s114, %s115
      %p124 = scmp.eq.s32.totalorder %s20, 0
      %p125 = por %p123, %p124
      %p126 = scmp.ne.s32.totalorder %s114, %s115
      %p127 = scmp.eq.s32.totalorder %s21, 1
      %p128 = por %p126, %p127
      %p130 = scmp.ne.s32.totalorder %s115, %s129
      %p131 = scmp.eq.s32.totalorder %s21, 0
      %p132 = por %p130, %p131
      %s134 = sadd.s32 %s133, 1
      %p137 = scmp.eq.s32.totalorder %s15, 1
      %p138 = scmp.ne.s32.totalorder %s133, %s135
      %p139 = scmp.eq.s32.totalorder %s15, 0
      %p140 = por %p138, %p139
      %p141 = scmp.ne.s32.totalorder %s133, %s135
      %p142 = scmp.eq.s32.totalorder %s20, 1
      %p143 = por %p141, %p142
      %p144 = scmp.ne.s32.totalorder %s135, %s136
      %p145 = scmp.eq.s32.totalorder %s20, 0
      %p146 = por %p144, %p145
      %p147 = scmp.ne.s32.totalorder %s135, %s136
      %p148 = scmp.eq.s32.totalorder %s21, 1
      %p149 = por %p147, %p148
      %p151 = scmp.ne.s32.totalorder %s136, %s150
      %p152 = scmp.eq.s32.totalorder %s21, 0
      %p153 = por %p151, %p152
      %s154 = ssub.s32 %s15, %s22
      %p155 = scmp.eq.s32.totalorder %s154, 0
      %s157 = sadd.s32 %s156, 1
      %s158 = scalar_select %p155, %s156, %s157
      %p161 = pneg %p155
      %p162 = scmp.eq.s32.totalorder %s15, 1
      %p163 = por %p161, %p162
      %p164 = scmp.ne.s32.totalorder %s156, %s159
      %p165 = scmp.eq.s32.totalorder %s15, 0
      %p166 = por %p164, %p165
      %p167 = scmp.ne.s32.totalorder %s156, %s159
      %p168 = scmp.eq.s32.totalorder %s20, 1
      %p169 = por %p167, %p168
      %p170 = scmp.ne.s32.totalorder %s159, %s160
      %p171 = scmp.eq.s32.totalorder %s20, 0
      %p172 = por %p170, %p171
      %p173 = scmp.ne.s32.totalorder %s159, %s160
      %p174 = scmp.eq.s32.totalorder %s21, 1
      %p175 = por %p173, %p174
      %p177 = scmp.ne.s32.totalorder %s160, %s176
      %p178 = scmp.eq.s32.totalorder %s21, 0
      %p179 = por %p177, %p178
      %p180 = scmp.le.s32.totalorder 1, %s15
      %p181 = scmp.lt.s32.totalorder %s15, 3
      %p182 = pnand %p180, %p181
      %p183 = pneg %p182
      // Predicated region
      $region9: #{tpu_custom_call.1} parent=5 // pred_check
        _
      $region10: #{tpu_custom_call.1} parent=5 // pred_check_branch
        %185 = sbr.rel (%p182) target = $region12
      $region11: #{tpu_custom_call.1} parent=5 // pred_region
        %s186 = ssub.s32 %s15, 1
        // Predicated region
        $region13: #{tpu_custom_call.1} parent=11 // pred_check
          %p187 = pneg %p62
        $region14: #{tpu_custom_call.1} parent=11 // pred_check_branch
          %189 = sbr.rel (%p187) target = $region16
        $region15: #{tpu_custom_call.1} parent=11 // pred_region
          _
        $region16: #{tpu_custom_call.1} parent=11 // pred_fallthru
          _
        // Predicated region
        $region17: #{tpu_custom_call.1} parent=11 // pred_check
          %p190 = pneg %p83
        $region18: #{tpu_custom_call.1} parent=11 // pred_check_branch
          %192 = sbr.rel (%p190) target = $region20
        $region19: #{tpu_custom_call.1} parent=11 // pred_region
          _
        $region20: #{tpu_custom_call.1} parent=11 // pred_fallthru
          _
        // Predicated region
        $region21: #{tpu_custom_call.1} parent=11 // pred_check
          %p193 = pneg %p104
        $region22: #{tpu_custom_call.1} parent=11 // pred_check_branch
          %195 = sbr.rel (%p193) target = $region24
        $region23: #{tpu_custom_call.1} parent=11 // pred_region
          _
        $region24: #{tpu_custom_call.1} parent=11 // pred_fallthru
          _
        // Predicated region
        $region25: #{tpu_custom_call.1} parent=11 // pred_check
          %p196 = pneg %p125
        $region26: #{tpu_custom_call.1} parent=11 // pred_check_branch
          %198 = sbr.rel (%p196) target = $region28
        $region27: #{tpu_custom_call.1} parent=11 // pred_region
          _
        $region28: #{tpu_custom_call.1} parent=11 // pred_fallthru
          _
        // Predicated region
        $region29: #{tpu_custom_call.1} parent=11 // pred_check
          %p199 = pneg %p146
        $region30: #{tpu_custom_call.1} parent=11 // pred_check_branch
          %201 = sbr.rel (%p199) target = $region32
        $region31: #{tpu_custom_call.1} parent=11 // pred_region
          _
        $region32: #{tpu_custom_call.1} parent=11 // pred_fallthru
          _
      $region12: #{tpu_custom_call.1} parent=5 // pred_fallthru
        _
      %p202 = scmp.lt.s32.totalorder %s15, 2
      // Predicated region
      $region33: #{tpu_custom_call.1} parent=5 // pred_check
        %p203 = pneg %p202
      $region34: #{tpu_custom_call.1} parent=5 // pred_check_branch
        %205 = sbr.rel (%p203) target = $region36
      $region35: #{tpu_custom_call.1} parent=5 // pred_region
        // Predicated region
        $region37: #{tpu_custom_call.1} parent=35 // pred_check
          %p206 = pneg %p35
        $region38: #{tpu_custom_call.1} parent=35 // pred_check_branch
          %208 = sbr.rel (%p206) target = $region40
        $region39: #{tpu_custom_call.1} parent=35 // pred_region
          %p209 = scmp.lt.s32.totalorder %s15, 1
          %s210 = scalar_select %p209, %s15, 1
          %s211 = smul.addr %s210, 4
          %s212 = smul.addr %s211, 8
          %s213 = scalar_lea.vmem %s0, %s212
        $region40: #{tpu_custom_call.1} parent=35 // pred_fallthru
          _
      $region36: #{tpu_custom_call.1} parent=5 // pred_fallthru
        _
      %p214 = scmp.le.s32.totalorder 1, %s15
      %p215 = scmp.lt.s32.totalorder %s15, 3
      %p216 = pnand %p214, %p215
      %p217 = pneg %p216
      // Predicated region
      $region41: #{tpu_custom_call.1} parent=5 // pred_check
        _
      $region42: #{tpu_custom_call.1} parent=5 // pred_check_branch
        %219 = sbr.rel (%p216) target = $region44
      $region43: #{tpu_custom_call.1} parent=5 // pred_region
        %s220 = ssub.s32 %s15, 1
        %p221 = scmp.lt.s32.totalorder %s20, 1
        %s222 = scalar_select %p221, %s20, 1
        %s223 = smul.addr %s222, 4
        %s224 = smul.addr %s223, 8
        %s225 = scalar_lea.vmem %s0, %s224
        %p226 = pneg %p41
        %p227 = pneg %p38
        %p228 = pneg %p62
        %p229 = pneg %p59
        %p230 = pneg %p83
        %p231 = pneg %p80
        %p232 = pneg %p104
        %p233 = pneg %p101
        %p234 = pneg %p125
        %p235 = pneg %p122
        %p236 = pneg %p146
        %p237 = pneg %p143
        %p238 = pneg %p172
        %p239 = pneg %p169
        %s240 = sand.u32 %s159, 1
        %s241 = scalar_lea.sflag [#allocation3], %s240
        %s242 = sand.u32 %s159, 1
        %s243 = smul.addr %s242, 16
        %s244 = scalar_lea.vmem [#allocation2], %s243
        %p245 = scmp.lt.s32.totalorder %s20, 1
        %s246 = scalar_select %p245, %s20, 1
        %s247 = smul.addr %s246, 4
        %s248 = smul.addr %s247, 8
        %s249 = scalar_lea.vmem %s0, %s248
        %v250 = vld [vmem:[%s249] sm:$0xff]
        %v251 = vld [vmem:[%s249 + $0x8] sm:$0xff]
        %v252 = vld [vmem:[%s249 + $0x10] sm:$0x1]
        %v253 = vld [vmem:[%s249 + $0x18] sm:$0x1]
        %v254 = vld [vmem:[%s1] sm:$0xff]
        %v255 = vld [vmem:[%s1 + $0x8] sm:$0xff]
        %v256 = vld [vmem:[%s1 + $0x10] sm:$0xff]
        %v257 = vld [vmem:[%s1 + $0x18] sm:$0xff]
        %v258 = vld [vmem:[%s1 + $0x20] sm:$0xff]
        %v259 = vld [vmem:[%s1 + $0x28] sm:$0xff]
        %v260 = vld [vmem:[%s1 + $0x30] sm:$0xff]
        %v261 = vld [vmem:[%s1 + $0x38] sm:$0xff]
        %v262 = vld [vmem:[%s1 + $0x40] sm:$0xff]
        %v263 = vld [vmem:[%s1 + $0x48] sm:$0xff]
        %v264 = vld [vmem:[%s1 + $0x50] sm:$0xff]
        %v265 = vld [vmem:[%s1 + $0x58] sm:$0xff]
        %v266 = vld [vmem:[%s1 + $0x60] sm:$0xff]
        %v267 = vld [vmem:[%s1 + $0x68] sm:$0xff]
        %v268 = vld [vmem:[%s1 + $0x70] sm:$0xff]
        %v269 = vld [vmem:[%s1 + $0x78] sm:$0xff]
        %v270 = vld [vmem:[%s1 + $0x80] sm:$0xff]
        %v271 = vld [vmem:[%s1 + $0x88] sm:$0xff]
        %v272 = vld [vmem:[%s2] sm:$0xff]
        %v273 = vld [vmem:[%s2 + $0x8] sm:$0xff]
        %v274 = vld [vmem:[%s2 + $0x10] sm:$0xff]
        %v275 = vld [vmem:[%s2 + $0x18] sm:$0xff]
        %v276 = vld [vmem:[%s2 + $0x20] sm:$0xff]
        %v277 = vld [vmem:[%s2 + $0x28] sm:$0xff]
        %v278 = vld [vmem:[%s2 + $0x30] sm:$0xff]
        %v279 = vld [vmem:[%s2 + $0x38] sm:$0xff]
        %v280 = vld [vmem:[%s2 + $0x40] sm:$0xff]
        %v281 = vld [vmem:[%s2 + $0x48] sm:$0xff]
        %v282 = vld [vmem:[%s2 + $0x50] sm:$0xff]
        %v283 = vld [vmem:[%s2 + $0x58] sm:$0xff]
        %v284 = vld [vmem:[%s2 + $0x60] sm:$0xff]
        %v285 = vld [vmem:[%s2 + $0x68] sm:$0xff]
        %v286 = vld [vmem:[%s2 + $0x70] sm:$0xff]
        %v287 = vld [vmem:[%s2 + $0x78] sm:$0xff]
        %v288 = vld [vmem:[%s2 + $0x80] sm:$0xff]
        %v289 = vld [vmem:[%s2 + $0x88] sm:$0xff]
        %vm294 = vcmask 1046528
        %v295 = vrot.slane %v250, 1
        %v296 = vrot.slane %v252, 1
        %v297 = vsel %vm294, %v295, %v296
        %v298 = vrot.slane %v251, 1
        %v299 = vrot.slane %v253, 1
        %v300 = vsel %vm294, %v298, %v299
        %vm302 = vcmask 130048
        %v303 = vsel %vm302, %v300, 0
        %305 = vmatpush.msra.mxu0 %v287
        %306 = vmatpush.msra.mxu0 %v286
        %307 = vmatpush.msra.mxu0 %v285
        %308 = vmatpush.msra.mxu0 %v284
        %309 = vmatpush.msra.mxu0 %v283
        %310 = vmatpush.msra.mxu0 %v282
        %311 = vmatpush.msra.mxu0 %v281
        %312 = vmatpush.msra.mxu0 %v280
        %313 = vmatpush.msra.mxu0 %v279
        %314 = vmatpush.msra.mxu0 %v278
        %315 = vmatpush.msra.mxu0 %v277
        %316 = vmatpush.msra.mxu0 %v276
        %317 = vmatpush.msra.mxu0 %v275
        %318 = vmatpush.msra.mxu0 %v274
        %319 = vmatpush.msra.mxu0 %v273
        %320 = vmatpush.msra.mxu0 %v272
        %321 = vmatmul.f32.gmra.mxu0 %v297
        %v322 = vpop.f32.mrf.mxu0
        %v323 = vadd.f32 0.0, %v322
        %324 = vdwg.mxu0
        %325 = vmatpush.msra.mxu0 0.0
        %326 = vmatpush.msra.mxu0 0.0
        %327 = vmatpush.msra.mxu0 0.0
        %328 = vmatpush.msra.mxu0 0.0
        %329 = vmatpush.msra.mxu0 0.0
        %330 = vmatpush.msra.mxu0 0.0
        %331 = vmatpush.msra.mxu0 0.0
        %332 = vmatpush.msra.mxu0 0.0
        %333 = vmatpush.msra.mxu0 0.0
        %334 = vmatpush.msra.mxu0 0.0
        %335 = vmatpush.msra.mxu0 0.0
        %336 = vmatpush.msra.mxu0 0.0
        %337 = vmatpush.msra.mxu0 0.0
        %338 = vmatpush.msra.mxu0 0.0
        %339 = vmatpush.msra.mxu0 %v289
        %340 = vmatpush.msra.mxu0 %v288
        %341 = vmatmul.f32.gmra.mxu0 %v303
        %v342 = vpop.f32.mrf.mxu0
        %v343 = vadd.f32 %v323, %v342
        %344 = vdwg.mxu0
        %v345 = vsel %vm302, %v251, 0
        %347 = vmatpush.msra.mxu0 %v269
        %348 = vmatpush.msra.mxu0 %v268
        %349 = vmatpush.msra.mxu0 %v267
        %350 = vmatpush.msra.mxu0 %v266
        %351 = vmatpush.msra.mxu0 %v265
        %352 = vmatpush.msra.mxu0 %v264
        %353 = vmatpush.msra.mxu0 %v263
        %354 = vmatpush.msra.mxu0 %v262
        %355 = vmatpush.msra.mxu0 %v261
        %356 = vmatpush.msra.mxu0 %v260
        %357 = vmatpush.msra.mxu0 %v259
        %358 = vmatpush.msra.mxu0 %v258
        %359 = vmatpush.msra.mxu0 %v257
        %360 = vmatpush.msra.mxu0 %v256
        %361 = vmatpush.msra.mxu0 %v255
        %362 = vmatpush.msra.mxu0 %v254
        %363 = vmatmul.f32.gmra.mxu0 %v250
        %v364 = vpop.f32.mrf.mxu0
        %v365 = vadd.f32 %v343, %v364
        %366 = vdwg.mxu0
        %367 = vmatpush.msra.mxu0 0.0
        %368 = vmatpush.msra.mxu0 0.0
        %369 = vmatpush.msra.mxu0 0.0
        %370 = vmatpush.msra.mxu0 0.0
        %371 = vmatpush.msra.mxu0 0.0
        %372 = vmatpush.msra.mxu0 0.0
        %373 = vmatpush.msra.mxu0 0.0
        %374 = vmatpush.msra.mxu0 0.0
        %375 = vmatpush.msra.mxu0 0.0
        %376 = vmatpush.msra.mxu0 0.0
        %377 = vmatpush.msra.mxu0 0.0
        %378 = vmatpush.msra.mxu0 0.0
        %379 = vmatpush.msra.mxu0 0.0
        %380 = vmatpush.msra.mxu0 0.0
        %381 = vmatpush.msra.mxu0 %v271
        %382 = vmatpush.msra.mxu0 %v270
        %383 = vmatmul.f32.gmra.mxu0 %v345
        %v384 = vpop.f32.mrf.mxu0
        %v385 = vadd.f32 %v365, %v384
        %386 = vdwg.mxu0
        %v387 = vld [vmem:[%s3] sm:$0x1]
        %v389 = vperm.slane %v387, 0
        %v391 = vadd.f32 %v385, %v389
        %v392 = vld [vmem:[%s4] sm:$0xff]
        %v393 = vld [vmem:[%s4 + $0x8] sm:$0xff]
        %vm394 = vcmask 64512
        %v396 = vsel %vm394, %v392, 0
        %v399 = vsel %vm394, %v393, 0
        %401 = vmatpush.msra.mxu0 0.0
        %402 = vmatpush.msra.mxu0 0.0
        %403 = vmatpush.msra.mxu0 0.0
        %404 = vmatpush.msra.mxu0 0.0
        %405 = vmatpush.msra.mxu0 0.0
        %406 = vmatpush.msra.mxu0 0.0
        %407 = vmatpush.msra.mxu0 0.0
        %408 = vmatpush.msra.mxu0 0.0
        %409 = vmatpush.msra.mxu0 0.0
        %410 = vmatpush.msra.mxu0 0.0
        %411 = vmatpush.msra.mxu0 0.0
        %412 = vmatpush.msra.mxu0 0.0
        %413 = vmatpush.msra.mxu0 0.0
        %414 = vmatpush.msra.mxu0 0.0
        %415 = vmatpush.msra.mxu0 0.0
        %416 = vmatpush.msra.mxu0 %v391
        %417 = vmatmul.f32.gmra.mxu0 %v396
        %v418 = vpop.f32.mrf.mxu0
        %v419 = vadd.f32 0.0, %v418
        %420 = vmatmul.f32.gmra.mxu0 %v399
        %v421 = vpop.f32.mrf.mxu0
        %v422 = vadd.f32 0.0, %v421
        %423 = vdwg.mxu0
        %v424 = vld [vmem:[%s5] sm:$0xff]
        %v425 = vld [vmem:[%s5 + $0x8] sm:$0xff]
        %v426 = vld [vmem:[%s5 + $0x10] sm:$0xff]
        %v427 = vld [vmem:[%s5 + $0x18] sm:$0xff]
        %v428 = vld [vmem:[%s5 + $0x20] sm:$0xff]
        %v429 = vld [vmem:[%s5 + $0x28] sm:$0xff]
        %v430 = vld [vmem:[%s5 + $0x30] sm:$0xff]
        %v431 = vld [vmem:[%s5 + $0x38] sm:$0xff]
        %vm432 = vcmask 523264
        %v434 = vsel %vm432, %v419, 0
        %v437 = vsel %vm432, %v422, 0
        %439 = vmatpush.msra.mxu0 0.0
        %440 = vmatpush.msra.mxu0 0.0
        %441 = vmatpush.msra.mxu0 0.0
        %442 = vmatpush.msra.mxu0 0.0
        %443 = vmatpush.msra.mxu0 0.0
        %444 = vmatpush.msra.mxu0 0.0
        %445 = vmatpush.msra.mxu0 0.0
        %446 = vmatpush.msra.mxu0 0.0
        %447 = vmatpush.msra.mxu0 %v431
        %448 = vmatpush.msra.mxu0 %v430
        %449 = vmatpush.msra.mxu0 %v429
        %450 = vmatpush.msra.mxu0 %v428
        %451 = vmatpush.msra.mxu0 %v427
        %452 = vmatpush.msra.mxu0 %v426
        %453 = vmatpush.msra.mxu0 %v425
        %454 = vmatpush.msra.mxu0 %v424
        %455 = vmatmul.f32.gmra.mxu0 %v434
        %v456 = vpop.f32.mrf.mxu0
        %v457 = vadd.f32 0.0, %v456
        %458 = vmatmul.f32.gmra.mxu0 %v437
        %v459 = vpop.f32.mrf.mxu0
        %v460 = vadd.f32 0.0, %v459
        %461 = vdwg.mxu0
        %462 = vst [vmem:[%s244] sm:$0xff] %v457
        %463 = vst [vmem:[%s244 + $0x8] sm:$0xff] %v460
        %s464 = sand.u32 %s159, 1
        %s465 = scalar_lea.sflag [#allocation3], %s464
        %s466 = sand.u32 %s159, 1
        %s467 = smul.addr %s466, 16
        %s468 = scalar_lea.vmem [#allocation2], %s467
        // Predicated region
        $region45: #{tpu_custom_call.1} parent=43 // pred_check
          %p469 = pneg %p169
        $region46: #{tpu_custom_call.1} parent=43 // pred_check_branch
          %471 = sbr.rel (%p469) target = $region48
        $region47: #{tpu_custom_call.1} parent=43 // pred_region
          %473 = vsyncadd %s465, 0
          %s474 = smul.addr %s20, 2
          %s475 = smul.addr %s474, 8
          %s476 = scalar_lea.hbm %s6, %s475
          %s477 = sshll.u32 %s468, 4
          %s478 = int_to_ptr.vmem [resolvable:$true] %s477
          %s479 = sshll.u32 %s476, 4
          %s480 = int_to_ptr.hbm [resolvable:$true] %s479
          %485 = dma.vmem_to_hbm [thread:$0]  %s478, 256, %s480, %s465, 128, 128, 8
        $region48: #{tpu_custom_call.1} parent=43 // pred_fallthru
          _
      $region44: #{tpu_custom_call.1} parent=5 // pred_fallthru
        _
      %p486 = scmp.le.s32.totalorder 2, %s15
      // Predicated region
      $region49: #{tpu_custom_call.1} parent=5 // pred_check
        %p487 = pneg %p486
      $region50: #{tpu_custom_call.1} parent=5 // pred_check_branch
        %489 = sbr.rel (%p487) target = $region52
      $region51: #{tpu_custom_call.1} parent=5 // pred_region
        %s490 = ssub.s32 %s15, 2
        // Predicated region
        $region53: #{tpu_custom_call.1} parent=51 // pred_check
          %p491 = pneg %p175
        $region54: #{tpu_custom_call.1} parent=51 // pred_check_branch
          %493 = sbr.rel (%p491) target = $region56
        $region55: #{tpu_custom_call.1} parent=51 // pred_region
          %s494 = sand.u32 %s160, 1
          %s495 = scalar_lea.sflag [#allocation3], %s494
          %s496 = sand.u32 %s160, 1
          %s497 = smul.addr %s496, 16
          %s498 = scalar_lea.vmem [#allocation2], %s497
          %500 = dma.done %s495, 256
        $region56: #{tpu_custom_call.1} parent=51 // pred_fallthru
          _
      $region52: #{tpu_custom_call.1} parent=5 // pred_fallthru
        _
    $region6: #{tpu_custom_call.1} parent=1 // loop_footer
      %s19 = sadd.s32 1, %s15
    $region7: #{tpu_custom_call.1} parent=1 // loop_footer_branch
      %14 = sbr.rel target = $region3
    $region8: #{tpu_custom_call.1} parent=1 // loop_exit
      _
    %501 = vsyncpa [#allocation3], 1
    %s502 = scalar_lea.sflag [#allocation3], 1
    %503 = vsyncpa %s502, 1

</llo_original>
